<compile_context>
chip_gen: v5e
topology: v5e:2x2
jax: 0.10.0
libtpu: 0.0.40
codegen_flags: <defaults>
</compile_context>

<pallas_src>
import math
from functools import partial

import jax
import jax.numpy as jnp
from jax.experimental import pallas as pl
from jax.experimental.pallas import tpu as pltpu

_LANE = 128


def _sparsity_loss_kernel(params_ref, stats_ref, out_ref):
    # Scalars from the single SMEM operand.
    upper = params_ref[0]        # annealed upper bound
    lower = params_ref[1]        # annealed lower bound
    target = params_ref[2]       # sparsity target
    inv_n = params_ref[3]        # 1 / n_layers

    # Per-layer statistics (kept 2-D: sublane x lane).  Padding lanes are zero.
    a_d = stats_ref[0:1, :]      # dilate: active_positions
    f_d = stats_ref[1:2, :]      # dilate: flops_per_position
    t_d = stats_ref[2:3, :]      # dilate: total_positions
    a_s = stats_ref[3:4, :]      # std:    active_positions
    f_s = stats_ref[4:5, :]      # std:    flops_per_position
    t_s = stats_ref[5:6, :]      # std:    total_positions

    # Per-layer cost / total (padding lanes: c = t = 0).
    c = a_d * f_d + a_s * f_s
    t = t_d * f_d + t_s * f_s

    # Padding lanes: guard the divide (0/1 = 0) and bias layer_perc to the
    # sparsity target so they land inside the hinge dead-zone -> zero penalty,
    # without any iota/valid mask.  (Real layers are assumed to have t > 0, as
    # the PyTorch module's asserts already require.)
    pad = (t == 0.0).astype(jnp.float32)
    layer_perc = c / (t + pad) + pad * target

    over = jnp.maximum(layer_perc - upper, 0.0)
    under = jnp.maximum(lower - layer_perc, 0.0)
    pen = over * over + under * under

    # Three direct lane (XLU) reductions; results stay in vregs as (1,1).
    s_pen = jnp.sum(pen, axis=-1, keepdims=True)   # (1, 1)
    s_c = jnp.sum(c, axis=-1, keepdims=True)       # (1, 1)
    s_t = jnp.sum(t, axis=-1, keepdims=True)       # (1, 1)

    diff = s_c / s_t - target                      # network MSE term
    loss = diff * diff + s_pen * inv_n             # (1, 1)

    # Lane-dense output row (unmasked vector store); caller slices [0, 0].
    out_ref[...] = jnp.broadcast_to(loss, out_ref.shape).astype(out_ref.dtype)


def pack_stats(active_dil, flops_dil, total_dil, active_std, flops_std,
               total_std):
    """Pack per-layer stats into the (6, N_pad) lane-major slab."""
    n = active_dil.shape[0]
    n_pad = _LANE * ((n + _LANE - 1) // _LANE)

    def pad(v):
        return jnp.pad(v.astype(jnp.float32), (0, n_pad - n))

    return jnp.stack([pad(active_dil), pad(flops_dil), pad(total_dil),
                      pad(active_std), pad(flops_std), pad(total_std)], axis=0)


@partial(jax.jit, static_argnames=("n_layers",))
def sparsity_loss_pallas(active_dil, flops_dil, total_dil,
                         active_std, flops_std, total_std,
                         upper_bound, lower_bound, sparsity_target,
                         *, n_layers):
    """Returns the scalar sparsity loss (network MSE + annealed block hinge)."""
    stats = pack_stats(active_dil, flops_dil, total_dil,
                       active_std, flops_std, total_std)
    params = jnp.stack([
        jnp.asarray(upper_bound, jnp.float32),
        jnp.asarray(lower_bound, jnp.float32),
        jnp.asarray(sparsity_target, jnp.float32),
        jnp.float32(1.0 / n_layers),
    ])
    out = pl.pallas_call(
        _sparsity_loss_kernel,
        out_shape=jax.ShapeDtypeStruct((1, _LANE), jnp.float32),
        in_specs=[
            pl.BlockSpec(memory_space=pltpu.MemorySpace.SMEM),   # params f32[4]
            pl.BlockSpec(memory_space=pltpu.MemorySpace.VMEM),   # stats slab
        ],
        out_specs=pl.BlockSpec(memory_space=pltpu.MemorySpace.VMEM),
    )(params, stats)
    return out[0, 0]


def _reference_loss(active_dil, flops_dil, total_dil,
                    active_std, flops_std, total_std,
                    upper_bound, lower_bound, sparsity_target):
    """Pure-JAX reference mirroring the PyTorch loop semantics."""
    c = active_dil * flops_dil + active_std * flops_std
    t = total_dil * flops_dil + total_std * flops_std
    layer_perc = c / t
    over = jnp.maximum(layer_perc - upper_bound, 0.0)
    under = jnp.maximum(lower_bound - layer_perc, 0.0)
    loss_block = jnp.sum(over ** 2 + under ** 2) / c.shape[0]
    perc = jnp.sum(c) / jnp.sum(t)
    loss_network = (perc - sparsity_target) ** 2
    return loss_network + loss_block


if __name__ == "__main__":
    # Module hyperparameters (deterministic, set in-script).
    sparsity_target = 0.5
    num_epochs = 100
    epoch = 10

    # Six mask groups (masks_11 ... masks_33), each with 2 (dilate, std) pairs.
    group_sizes = [2, 2, 2, 2, 2, 2]
    n_layers = sum(group_sizes)

    # Deterministic synthetic mask statistics (active <= total so that
    # layer_perc is guaranteed to lie in [0, 1], as the module asserts).
    key = jax.random.PRNGKey(0)
    k0, k1, k2, k3 = jax.random.split(key, 4)
    total_dil = jax.random.randint(k0, (n_layers,), 64, 256).astype(jnp.float32)
    total_std = jax.random.randint(k1, (n_layers,), 64, 256).astype(jnp.float32)
    frac_dil = jax.random.uniform(k2, (n_layers,), minval=0.1, maxval=0.9)
    frac_std = jax.random.uniform(k3, (n_layers,), minval=0.1, maxval=0.9)
    active_dil = jnp.floor(total_dil * frac_dil)
    active_std = jnp.floor(total_std * frac_std)
    flops_dil = jnp.full((n_layers,), 9.0 * 64.0, dtype=jnp.float32)   # 3x3 conv, 64 ch
    flops_std = jnp.full((n_layers,), 9.0 * 128.0, dtype=jnp.float32)  # 3x3 conv, 128 ch

    # Annealing schedule (host-side scalar math, as in the PyTorch forward),
    # then moved to device scalars so the jitted wrapper does not recompile
    # per epoch.
    p = epoch / (0.33 * num_epochs)
    progress = math.cos(min(max(p, 0.0), 1.0) * (math.pi / 2)) ** 2
    upper_bound = jnp.float32(1.0 - progress * (1.0 - sparsity_target))
    lower_bound = jnp.float32(progress * sparsity_target)
    target_dev = jnp.float32(sparsity_target)

    loss = sparsity_loss_pallas(active_dil, flops_dil, total_dil,
                                active_std, flops_std, total_std,
                                upper_bound, lower_bound, target_dev,
                                n_layers=n_layers)
    jax.block_until_ready(loss)

    ref = _reference_loss(active_dil, flops_dil, total_dil,
                          active_std, flops_std, total_std,
                          upper_bound, lower_bound, sparsity_target)
    assert jnp.allclose(loss, ref, rtol=1e-5, atol=1e-6), (loss, ref)

    print("KERNEL_OK")
</pallas_src>

<mosaic_0001>
module attributes {stable_mosaic.version = 11 : i64} {
  func.func @_sparsity_loss_kernel(%arg0: memref<4xf32, #tpu.memory_space<smem>>, %arg1: memref<6x128xf32, #tpu.memory_space<vmem>>, %arg2: memref<1x128xf32, #tpu.memory_space<vmem>>) attributes {dimension_semantics = [], scalar_prefetch = 0 : i64, scratch_operands = 0 : i64, tpu.core_type = #tpu.core_type<tc>} {
    %c0 = arith.constant 0 : index
    %0 = memref.load %arg0[%c0] : memref<4xf32, #tpu.memory_space<smem>>
    %c1 = arith.constant 1 : index
    %1 = memref.load %arg0[%c1] : memref<4xf32, #tpu.memory_space<smem>>
    %c2 = arith.constant 2 : index
    %2 = memref.load %arg0[%c2] : memref<4xf32, #tpu.memory_space<smem>>
    %c3 = arith.constant 3 : index
    %3 = memref.load %arg0[%c3] : memref<4xf32, #tpu.memory_space<smem>>
    %c0_0 = arith.constant 0 : index
    %c0_1 = arith.constant 0 : index
    %4 = vector.load %arg1[%c0_0, %c0_1] : memref<6x128xf32, #tpu.memory_space<vmem>>, vector<1x128xf32>
    %c1_2 = arith.constant 1 : index
    %c0_3 = arith.constant 0 : index
    %5 = vector.load %arg1[%c1_2, %c0_3] : memref<6x128xf32, #tpu.memory_space<vmem>>, vector<1x128xf32>
    %c2_4 = arith.constant 2 : index
    %c0_5 = arith.constant 0 : index
    %6 = vector.load %arg1[%c2_4, %c0_5] : memref<6x128xf32, #tpu.memory_space<vmem>>, vector<1x128xf32>
    %c3_6 = arith.constant 3 : index
    %c0_7 = arith.constant 0 : index
    %7 = vector.load %arg1[%c3_6, %c0_7] : memref<6x128xf32, #tpu.memory_space<vmem>>, vector<1x128xf32>
    %c4 = arith.constant 4 : index
    %c0_8 = arith.constant 0 : index
    %8 = vector.load %arg1[%c4, %c0_8] : memref<6x128xf32, #tpu.memory_space<vmem>>, vector<1x128xf32>
    %c5 = arith.constant 5 : index
    %c0_9 = arith.constant 0 : index
    %9 = vector.load %arg1[%c5, %c0_9] : memref<6x128xf32, #tpu.memory_space<vmem>>, vector<1x128xf32>
    %10 = arith.mulf %4, %5 : vector<1x128xf32>
    %11 = arith.mulf %7, %8 : vector<1x128xf32>
    %12 = arith.addf %10, %11 : vector<1x128xf32>
    %13 = arith.mulf %6, %5 : vector<1x128xf32>
    %14 = arith.mulf %9, %8 : vector<1x128xf32>
    %15 = arith.addf %13, %14 : vector<1x128xf32>
    %cst = arith.constant 0.000000e+00 : f32
    %16 = vector.broadcast %cst : f32 to vector<1x128xf32>
    %17 = arith.cmpf oeq, %15, %16 : vector<1x128xf32>
    %18 = arith.extui %17 : vector<1x128xi1> to vector<1x128xi32>
    %19 = arith.sitofp %18 : vector<1x128xi32> to vector<1x128xf32>
    %20 = arith.addf %15, %19 : vector<1x128xf32>
    %21 = arith.divf %12, %20 : vector<1x128xf32>
    %22 = vector.broadcast %2 : f32 to vector<1x128xf32>
    %23 = arith.mulf %19, %22 : vector<1x128xf32>
    %24 = arith.addf %21, %23 : vector<1x128xf32>
    %25 = vector.broadcast %0 : f32 to vector<1x128xf32>
    %26 = arith.subf %24, %25 : vector<1x128xf32>
    %cst_10 = arith.constant 0.000000e+00 : f32
    %27 = vector.broadcast %cst_10 : f32 to vector<1x128xf32>
    %28 = arith.maximumf %26, %27 : vector<1x128xf32>
    %29 = vector.broadcast %1 : f32 to vector<1x128xf32>
    %30 = arith.subf %29, %24 : vector<1x128xf32>
    %cst_11 = arith.constant 0.000000e+00 : f32
    %31 = vector.broadcast %cst_11 : f32 to vector<1x128xf32>
    %32 = arith.maximumf %30, %31 : vector<1x128xf32>
    %33 = arith.mulf %28, %28 : vector<1x128xf32>
    %34 = arith.mulf %32, %32 : vector<1x128xf32>
    %35 = arith.addf %33, %34 : vector<1x128xf32>
    %cst_12 = arith.constant dense<0.000000e+00> : vector<1xf32>
    %36 = vector.multi_reduction <add>, %35, %cst_12 [1] : vector<1x128xf32> to vector<1xf32>
    %37 = vector.shape_cast %36 : vector<1xf32> to vector<1x1xf32>
    %cst_13 = arith.constant dense<0.000000e+00> : vector<1xf32>
    %38 = vector.multi_reduction <add>, %12, %cst_13 [1] : vector<1x128xf32> to vector<1xf32>
    %39 = vector.shape_cast %38 : vector<1xf32> to vector<1x1xf32>
    %cst_14 = arith.constant dense<0.000000e+00> : vector<1xf32>
    %40 = vector.multi_reduction <add>, %15, %cst_14 [1] : vector<1x128xf32> to vector<1xf32>
    %41 = vector.shape_cast %40 : vector<1xf32> to vector<1x1xf32>
    %42 = arith.divf %39, %41 : vector<1x1xf32>
    %43 = vector.broadcast %2 : f32 to vector<1x1xf32>
    %44 = arith.subf %42, %43 : vector<1x1xf32>
    %45 = arith.mulf %44, %44 : vector<1x1xf32>
    %46 = vector.broadcast %3 : f32 to vector<1x1xf32>
    %47 = arith.mulf %37, %46 : vector<1x1xf32>
    %48 = arith.addf %45, %47 : vector<1x1xf32>
    %49 = vector.shape_cast %48 : vector<1x1xf32> to vector<1x1xf32>
    %50 = vector.broadcast %49 : vector<1x1xf32> to vector<1x128xf32>
    %c0_15 = arith.constant 0 : index
    %c0_16 = arith.constant 0 : index
    %51 = vector.load %arg2[%c0_15, %c0_16] : memref<1x128xf32, #tpu.memory_space<vmem>>, vector<1x128xf32>
    tpu.vector_store %arg2[%c0_15, %c0_16], %50 {strides = array<i32>} : memref<1x128xf32, #tpu.memory_space<vmem>>, vector<1x128xf32>,
    return
  }
}

</mosaic_0001>

<llo_original>
// kernel: sparsity_loss_pallas.1
$region0: #{sparsity_loss_pallas.1}
  #allocation0 [shape = 'u32[]', space=smem, size = 0x4, offset = 0x4, fixed_abs, tag = 'smem constant byte address 0x4 - core index']
  #allocation1 [shape = 'u32[72,128]{1,0:T(1,128)}', space=vmem, size = 0x9000, scoped, tag = 'internal scratch']
  %s0 = inlined_call_operand.vmem [shape: f32[4], index: 0, kind: input, shape index: {}]
  %s1 = inlined_call_operand.vmem [shape: f32[6,128], index: 1, kind: input, shape index: {}]
  %s2 = inlined_call_operand.hbm [shape: f32[1,128], index: 2, kind: output, shape index: {}]
  %s3 = sld [smem:[#allocation0]]
  $region22: #{sparsity_loss_pallas.1} parent=0
    _
  %s5 = ssub.s32 1, %s3
  %s6 = scalar_select 0, %s5, %s3
  $region1: #{sparsity_loss_pallas.1} parent=0
    #allocation2 [shape = 'u8[512]{0}', space=smem, size = 0x200, scoped, tag = 'input window, operand 0, single buffered']
    #allocation3 [shape = 's32[1]{0}', space=sflag, size = 0x4, scoped, tag = 'scoped memory for sparsity_loss_pallas.1']
    #allocation4 [shape = 's32[1]{0}', space=sflag, size = 0x4, scoped, tag = 'scoped memory for sparsity_loss_pallas.1']
    #allocation5 [shape = 'u8[512]{0}', space=vmem, size = 0x400, scoped, tag = 'output window, operand 0, single buffered']
    %7 = vsyncpa [#allocation4], 0
    %8 = vsyncpa [#allocation3], 0
    // Predicated region
    $region2: #{sparsity_loss_pallas.1} parent=1 // pred_check
      _
    $region3: #{sparsity_loss_pallas.1} parent=1 // pred_check_branch
      %10 = sbr.rel (0) target = $region5
    $region4: #{sparsity_loss_pallas.1} parent=1 // pred_region
      %12 = vsyncadd [#allocation4], 0
      %s14 = sshll.u32 %s0, 4
      %s15 = int_to_ptr.vmem [resolvable:$true] %s14
      %17 = dma.vmem_to_smem %s15, 16, [#allocation2], [#allocation4]
    $region5: #{sparsity_loss_pallas.1} parent=1 // pred_fallthru
      _
    // Predicated region
    $region6: #{sparsity_loss_pallas.1} parent=1 // pred_check
      _
    $region7: #{sparsity_loss_pallas.1} parent=1 // pred_check_branch
      %19 = sbr.rel (0) target = $region9
    $region8: #{sparsity_loss_pallas.1} parent=1 // pred_region
      _
    $region9: #{sparsity_loss_pallas.1} parent=1 // pred_fallthru
      _
    // Predicated region
    $region10: #{sparsity_loss_pallas.1} parent=1 // pred_check
      _
    $region11: #{sparsity_loss_pallas.1} parent=1 // pred_check_branch
      %21 = sbr.rel (0) target = $region13
    $region12: #{sparsity_loss_pallas.1} parent=1 // pred_region
      %23 = dma.done [#allocation4], 16
    $region13: #{sparsity_loss_pallas.1} parent=1 // pred_fallthru
      _
    %24 = sfence
    %s25 = sld [smem:[#allocation2]]
    %s26 = sld [smem:[#allocation2 + $0x1]]
    %s27 = sld [smem:[#allocation2 + $0x2]]
    %s28 = sld [smem:[#allocation2 + $0x3]]
    %v29 = vld [vmem:[%s1] sm:$0x1]
    %v30 = vld [vmem:[%s1 + $0x1] sm:$0x1]
    %v31 = vld [vmem:[%s1 + $0x2] sm:$0x1]
    %v32 = vld [vmem:[%s1 + $0x3] sm:$0x1]
    %v33 = vld [vmem:[%s1 + $0x4] sm:$0x1]
    %v34 = vld [vmem:[%s1 + $0x5] sm:$0x1]
    %v35 = vmul.f32 %v29, %v30
    %v36 = vmul.f32 %v32, %v33
    %v37 = vadd.f32 %v35, %v36
    %v38 = vmul.f32 %v31, %v30
    %v39 = vmul.f32 %v34, %v33
    %v40 = vadd.f32 %v38, %v39
    %vm41 = vcmp.eq.f32.partialorder %v40, 0.0
    %v42 = vsel %vm41, 1, 0
    %v43 = vcvt.s32.f32 %v42
    %v44 = vadd.f32 %v40, %v43
    %v45 = vrcp.pop %v44
    %v46 = vmul.f32 %v44, %v45
    %v47 = vsub.f32 1.0, %v46
    %v48 = vmul.f32 %v45, %v47
    %v49 = vadd.f32 %v45, %v48
    %vm50 = vweird.f32 %v44
    %vm51 = vweird.f32 %v45
    %vm52 = vmor %vm50, %vm51
    %v53 = vsel %vm52, %v45, %v49
    %v54 = vand.u32 2147483647, %v44
    %vm55 = vcmp.eq.f32.partialorder %v54, 8.507059e+37
    %v56 = vand.u32 %v44, 2147483648
    %v57 = vor.u32 1.1754944e-38, %v56
    %v58 = vsel %vm55, %v57, %v53
    %v59 = vmul.f32 %v37, %v58
    %v60 = vstv %s27
    %v61 = vmul.f32 %v43, %v60
    %v62 = vadd.f32 %v59, %v61
    %v63 = vstv %s25
    %v64 = vsub.f32 %v62, %v63
    %v65 = vmax.f32 %v64, 0.0
    %v66 = vstv %s26
    %v67 = vsub.f32 %v66, %v62
    %v68 = vmax.f32 %v67, 0.0
    %v69 = vmul.f32 %v65, %v65
    %v70 = vmul.f32 %v68, %v68
    %v71 = vadd.f32 %v69, %v70
    %vm72 = vcmask 1040384
    %v73 = vsel %vm72, %v71, 0.0
    %74 = vadd.xlane.f32.xlu0 %v73
    %v75 = vpop.xlane.xlu0 %74
    %v76 = vsel %vm72, %v37, 0.0
    %77 = vadd.xlane.f32.xlu0 %v76
    %v78 = vpop.xlane.xlu0 %77
    %v79 = vsel %vm72, %v40, 0.0
    %80 = vadd.xlane.f32.xlu0 %v79
    %v81 = vpop.xlane.xlu0 %80
    %v82 = vrcp.pop %v81
    %v83 = vmul.f32 %v81, %v82
    %v84 = vsub.f32 1.0, %v83
    %v85 = vmul.f32 %v82, %v84
    %v86 = vadd.f32 %v82, %v85
    %vm87 = vweird.f32 %v81
    %vm88 = vweird.f32 %v82
    %vm89 = vmor %vm87, %vm88
    %v90 = vsel %vm89, %v82, %v86
    %v91 = vand.u32 2147483647, %v81
    %vm92 = vcmp.eq.f32.partialorder %v91, 8.507059e+37
    %v93 = vand.u32 %v81, 2147483648
    %v94 = vor.u32 1.1754944e-38, %v93
    %v95 = vsel %vm92, %v94, %v90
    %v96 = vmul.f32 %v78, %v95
    %v97 = vsub.f32 %v96, %v60
    %v98 = vmul.f32 %v97, %v97
    %v99 = vstv %s28
    %v100 = vmul.f32 %v75, %v99
    %v101 = vadd.f32 %v98, %v100
    %102 = vst [vmem:[#allocation5] sm:$0x1] %v101
    // Predicated region
    $region14: #{sparsity_loss_pallas.1} parent=1 // pred_check
      _
    $region15: #{sparsity_loss_pallas.1} parent=1 // pred_check_branch
      %104 = sbr.rel (0) target = $region17
    $region16: #{sparsity_loss_pallas.1} parent=1 // pred_region
      %106 = vsyncadd [#allocation3], 0
      %s108 = sshll.u32 [#allocation5], 4
      %s109 = int_to_ptr.vmem [resolvable:$true] %s108
      %s110 = sshll.u32 %s2, 4
      %s111 = int_to_ptr.hbm [resolvable:$true] %s110
      %113 = dma.vmem_to_hbm [thread:$0]  %s109, 16, %s111, [#allocation3]
    $region17: #{sparsity_loss_pallas.1} parent=1 // pred_fallthru
      _
    // Predicated region
    $region18: #{sparsity_loss_pallas.1} parent=1 // pred_check
      _
    $region19: #{sparsity_loss_pallas.1} parent=1 // pred_check_branch
      %115 = sbr.rel (0) target = $region21
    $region20: #{sparsity_loss_pallas.1} parent=1 // pred_region
      %117 = dma.done [#allocation3], 16
    $region21: #{sparsity_loss_pallas.1} parent=1 // pred_fallthru
      _
    %118 = vsyncpa [#allocation3], 1
    %119 = vsyncpa [#allocation4], 1

</llo_original>
